<compile_context>
chip_gen: v6e
topology: v6e:2x2x1
jax: 0.10.0
libtpu: 0.0.40
codegen_flags: <defaults>
</compile_context>

<pallas_src>
import functools

import jax
import jax.numpy as jnp
from jax import lax
from jax.experimental import pallas as pl
from jax.experimental.pallas import tpu as pltpu


def _round_up(x, m):
    return ((x + m - 1) // m) * m


def _choose_tile_b(batch, d_pad, max_tile_b):
    # Lane-dense batch tiles (multiples of 128).  Double-buffered gama blocks
    # cost 2 tables x 2 buffers x d_pad x tile_b x 4 B of VMEM; keep that under
    # ~16 MiB so it fits comfortably inside the scoped-VMEM budget on
    # v5e / v6e (128 MiB phys) *and* v7x (64 MiB phys, 32 MiB scoped default).
    budget_bytes = 16 * 1024 * 1024
    vmem_rows = max(128, (budget_bytes // (16 * d_pad)) // 128 * 128)
    cap = max(128, (max_tile_b // 128) * 128)
    tile = min(cap, _round_up(max(batch, 1), 128))
    return min(tile, vmem_rows)


def bpr_forward_kernel(ug_ref, ig_ref, scale_ref, beta_ref, out_ref):
    """One lane-dense batch tile.

    ug_ref, ig_ref : (D, TILE_B) gathered gama rows (feature on sublanes,
                     batch on lanes)
    scale_ref      : (D, 2) reciprocal column norms for F.normalize(dim=0)
                     (col 0 = user table, col 1 = item table)
    beta_ref       : (1, TILE_B) pre-normalized user_beta + item_beta
    out_ref        : (1, TILE_B) predictions
    """
    ug = ug_ref[...]
    ig = ig_ref[...]
    su = scale_ref[:, 0:1]                 # (D, 1)
    si = scale_ref[:, 1:2]                 # (D, 1)

    # F.normalize(x, dim=0): one broadcast multiply per table (the scales were
    # computed once in the wrapper), instead of per-element divides.
    ugn = ug * su
    ign = ig * si

    # F.cosine_similarity(user_gama, item_gama, dim=-1): the feature axis is on
    # sublanes, so these reduces produce lane-dense (1, TILE_B) vectors.
    dot = jnp.sum(ugn * ign, axis=0, keepdims=True)
    nu2 = jnp.sum(ugn * ugn, axis=0, keepdims=True)
    ni2 = jnp.sum(ign * ign, axis=0, keepdims=True)

    eps2 = jnp.float32(1e-16)              # (1e-8)^2, matches cosine_similarity eps
    cos = dot * lax.rsqrt(jnp.maximum(nu2, eps2) * jnp.maximum(ni2, eps2))

    # pred = item_beta + user_beta + cos_sim  (beta already normalized+summed)
    out_ref[...] = beta_ref[...] + cos


@functools.partial(jax.jit, static_argnames=("max_tile_b",))
def bpr_forward(user_gama_t, item_gama_t, user_beta_t, item_beta_t,
                users, items, *, max_tile_b=16384):
    """Full forward: gather -> dim=0 normalize -> cosine -> +beta. Returns (B,).

    Tables are stored feature-major: user_gama_t (D, U), item_gama_t (D, I),
    user_beta_t (1, U), item_beta_t (1, I), so the gather output is already in
    the kernel's lane-dense layout (no transpose pass over batch-sized data).
    """
    B = users.shape[0]
    D = user_gama_t.shape[0]
    eps0 = jnp.float32(1e-12)

    d_pad = _round_up(D, 8)
    tile_b = _choose_tile_b(B, d_pad, max_tile_b)
    b_pad = _round_up(B, tile_b)

    # Pad the *indices* (not the gathered data) so the grid tiles evenly.
    users_p = jnp.pad(users, (0, b_pad - B))
    items_p = jnp.pad(items, (0, b_pad - B))

    # Embedding gathers straight into the lane-dense (D, b_pad) layout.
    ug_t = jnp.take(user_gama_t, users_p, axis=1).astype(jnp.float32)   # (D, b_pad)
    ig_t = jnp.take(item_gama_t, items_p, axis=1).astype(jnp.float32)   # (D, b_pad)
    ub = jnp.take(user_beta_t, users_p, axis=1).astype(jnp.float32)     # (1, b_pad)
    ib = jnp.take(item_beta_t, items_p, axis=1).astype(jnp.float32)     # (1, b_pad)

    # Hoisted F.normalize(dim=0) statistics over the *real* rows only
    # (padded lanes must not contribute to the column norms), computed from
    # the dense lane-major arrays (single, unpadded pass).
    inv_cu = 1.0 / jnp.maximum(
        jnp.sqrt(jnp.sum(jnp.square(ug_t[:, :B]), axis=1)), eps0)       # (D,)
    inv_ci = 1.0 / jnp.maximum(
        jnp.sqrt(jnp.sum(jnp.square(ig_t[:, :B]), axis=1)), eps0)       # (D,)
    inv_bu = 1.0 / jnp.maximum(jnp.sqrt(jnp.sum(jnp.square(ub[:, :B]))), eps0)
    inv_bi = 1.0 / jnp.maximum(jnp.sqrt(jnp.sum(jnp.square(ib[:, :B]))), eps0)

    beta = ub * inv_bu + ib * inv_bi                                    # (1, b_pad)
    scales = jnp.stack([inv_cu, inv_ci], axis=1)                        # (D, 2)

    if d_pad != D:
        ug_t = jnp.pad(ug_t, ((0, d_pad - D), (0, 0)))
        ig_t = jnp.pad(ig_t, ((0, d_pad - D), (0, 0)))
        scales = jnp.pad(scales, ((0, d_pad - D), (0, 0)))

    grid = (b_pad // tile_b,)
    out = pl.pallas_call(
        bpr_forward_kernel,
        out_shape=jax.ShapeDtypeStruct((1, b_pad), jnp.float32),
        grid=grid,
        in_specs=[
            pl.BlockSpec((d_pad, tile_b), lambda t: (0, t)),   # user gama tile
            pl.BlockSpec((d_pad, tile_b), lambda t: (0, t)),   # item gama tile
            pl.BlockSpec((d_pad, 2), lambda t: (0, 0)),        # merged column scales
            pl.BlockSpec((1, tile_b), lambda t: (0, t)),       # normalized beta sum
        ],
        out_specs=pl.BlockSpec((1, tile_b), lambda t: (0, t)),
        compiler_params=pltpu.CompilerParams(
            dimension_semantics=("parallel",),
            vmem_limit_bytes=32 * 1024 * 1024,
        ),
    )(ug_t, ig_t, scales, beta)

    return out[0, :B]


class BPRPallas:
    """JAX/Pallas port of the PyTorch BPR module (with_Nor=True, cos=True)."""

    def __init__(self, user_num, item_num, hidden_dim=32, seed=0):
        self.hidden_dim = hidden_dim
        key = jax.random.PRNGKey(seed)
        k1, k2, k3, k4 = jax.random.split(key, 4)
        # nn.init.uniform_(w, 0, 0.01).  Tables are kept transposed (feature-
        # major) so per-batch gathers land directly in the kernel's lane-dense
        # layout; the transpose here is a one-time init cost, not per forward.
        self.user_gama_t = jax.random.uniform(
            k1, (user_num, hidden_dim), jnp.float32, 0.0, 0.01).T    # (D, U)
        self.item_gama_t = jax.random.uniform(
            k2, (item_num, hidden_dim), jnp.float32, 0.0, 0.01).T    # (D, I)
        self.user_beta_t = jax.random.uniform(
            k3, (user_num, 1), jnp.float32, 0.0, 0.01).T             # (1, U)
        self.item_beta_t = jax.random.uniform(
            k4, (item_num, 1), jnp.float32, 0.0, 0.01).T             # (1, I)

    def forward(self, users, items, max_tile_b=16384):
        return bpr_forward(self.user_gama_t, self.item_gama_t,
                           self.user_beta_t, self.item_beta_t,
                           users, items, max_tile_b=max_tile_b)


def _reference(model, users, items):
    # Pure-JAX reference of the PyTorch forward.
    ug = jnp.take(model.user_gama_t.T, users, axis=0)   # (B, D)
    ig = jnp.take(model.item_gama_t.T, items, axis=0)   # (B, D)
    ub = jnp.take(model.user_beta_t.T, users, axis=0)   # (B, 1)
    ib = jnp.take(model.item_beta_t.T, items, axis=0)   # (B, 1)

    def norm0(x):  # F.normalize(x, dim=0), eps=1e-12
        n = jnp.sqrt(jnp.sum(x * x, axis=0, keepdims=True))
        return x / jnp.maximum(n, 1e-12)

    ug, ig, ub, ib = norm0(ug), norm0(ig), norm0(ub), norm0(ib)
    dot = jnp.sum(ug * ig, axis=-1)
    nu = jnp.sqrt(jnp.sum(ug * ug, axis=-1))
    ni = jnp.sqrt(jnp.sum(ig * ig, axis=-1))
    cos = dot / (jnp.maximum(nu, 1e-8) * jnp.maximum(ni, 1e-8))
    return ib[:, 0] + ub[:, 0] + cos


def _check(model, users, items, max_tile_b=16384):
    pred = jax.block_until_ready(
        model.forward(users, items, max_tile_b=max_tile_b))
    ref = _reference(model, users, items)
    assert pred.shape == (users.shape[0],)
    err = float(jnp.max(jnp.abs(pred - ref)))
    assert jnp.allclose(pred, ref, atol=1e-5, rtol=1e-5), err


if __name__ == "__main__":
    USER_NUM, ITEM_NUM, HIDDEN = 64, 128, 32
    model = BPRPallas(USER_NUM, ITEM_NUM, hidden_dim=HIDDEN, seed=0)

    key = jax.random.PRNGKey(0)
    k1, k2, k3, k4 = jax.random.split(key, 4)

    # Small demo batch (single 128-wide lane tile after padding).
    B1 = 8
    users1 = jax.random.randint(k1, (B1,), 0, USER_NUM, dtype=jnp.int32)
    items1 = jax.random.randint(k2, (B1,), 0, ITEM_NUM, dtype=jnp.int32)
    _check(model, users1, items1)

    # Multi-tile grid + padded-tail correctness (tile forced small to exercise
    # several grid steps while keeping shapes small).
    B2 = 300
    users2 = jax.random.randint(k3, (B2,), 0, USER_NUM, dtype=jnp.int32)
    items2 = jax.random.randint(k4, (B2,), 0, ITEM_NUM, dtype=jnp.int32)
    _check(model, users2, items2, max_tile_b=128)

    print("KERNEL_OK")
</pallas_src>

<mosaic_0001>
module attributes {stable_mosaic.version = 11 : i64} {
  func.func @bpr_forward_kernel(%arg0: i32, %arg1: memref<32x128xf32, #tpu.memory_space<vmem>>, %arg2: memref<32x128xf32, #tpu.memory_space<vmem>>, %arg3: memref<32x2xf32, #tpu.memory_space<vmem>>, %arg4: memref<1x128xf32, #tpu.memory_space<vmem>>, %arg5: memref<1x128xf32, #tpu.memory_space<vmem>>) attributes {dimension_semantics = [#tpu.dimension_semantics<parallel>], iteration_bounds = array<i64: 1>, scalar_prefetch = 0 : i64, scratch_operands = 0 : i64, tpu.core_type = #tpu.core_type<tc>, window_params = [{transform_indices = @transform_0, window_bounds = array<i64: 32, 128>}, {transform_indices = @transform_1, window_bounds = array<i64: 32, 128>}, {pipeline_mode = #tpu.pipeline_mode<synchronous>, transform_indices = @transform_2, window_bounds = array<i64: 32, 2>}, {transform_indices = @transform_3, window_bounds = array<i64: 1, 128>}, {transform_indices = @transform_4, window_bounds = array<i64: 1, 128>}]} {
    %c0 = arith.constant 0 : index
    %c0_0 = arith.constant 0 : index
    %0 = vector.load %arg1[%c0, %c0_0] : memref<32x128xf32, #tpu.memory_space<vmem>>, vector<32x128xf32>
    %c0_1 = arith.constant 0 : index
    %c0_2 = arith.constant 0 : index
    %1 = vector.load %arg2[%c0_1, %c0_2] : memref<32x128xf32, #tpu.memory_space<vmem>>, vector<32x128xf32>
    %c0_3 = arith.constant 0 : index
    %c0_4 = arith.constant 0 : index
    %2 = vector.load %arg3[%c0_3, %c0_4] : memref<32x2xf32, #tpu.memory_space<vmem>>, vector<32x1xf32>
    %c0_5 = arith.constant 0 : index
    %c1 = arith.constant 1 : index
    %3 = vector.load %arg3[%c0_5, %c1] : memref<32x2xf32, #tpu.memory_space<vmem>>, vector<32x1xf32>
    %4 = vector.broadcast %2 : vector<32x1xf32> to vector<32x128xf32>
    %5 = arith.mulf %0, %4 : vector<32x128xf32>
    %6 = vector.broadcast %3 : vector<32x1xf32> to vector<32x128xf32>
    %7 = arith.mulf %1, %6 : vector<32x128xf32>
    %8 = arith.mulf %5, %7 : vector<32x128xf32>
    %cst = arith.constant dense<0.000000e+00> : vector<128xf32>
    %9 = vector.multi_reduction <add>, %8, %cst [0] : vector<32x128xf32> to vector<128xf32>
    %10 = vector.shape_cast %9 : vector<128xf32> to vector<1x128xf32>
    %11 = arith.mulf %5, %5 : vector<32x128xf32>
    %cst_6 = arith.constant dense<0.000000e+00> : vector<128xf32>
    %12 = vector.multi_reduction <add>, %11, %cst_6 [0] : vector<32x128xf32> to vector<128xf32>
    %13 = vector.shape_cast %12 : vector<128xf32> to vector<1x128xf32>
    %14 = arith.mulf %7, %7 : vector<32x128xf32>
    %cst_7 = arith.constant dense<0.000000e+00> : vector<128xf32>
    %15 = vector.multi_reduction <add>, %14, %cst_7 [0] : vector<32x128xf32> to vector<128xf32>
    %16 = vector.shape_cast %15 : vector<128xf32> to vector<1x128xf32>
    %cst_8 = arith.constant 1.000000e-16 : f32
    %17 = vector.broadcast %cst_8 : f32 to vector<1x128xf32>
    %18 = arith.maximumf %13, %17 : vector<1x128xf32>
    %cst_9 = arith.constant 1.000000e-16 : f32
    %19 = vector.broadcast %cst_9 : f32 to vector<1x128xf32>
    %20 = arith.maximumf %16, %19 : vector<1x128xf32>
    %21 = arith.mulf %18, %20 : vector<1x128xf32>
    %22 = math.rsqrt %21 : vector<1x128xf32>
    %23 = arith.mulf %10, %22 : vector<1x128xf32>
    %c0_10 = arith.constant 0 : index
    %c0_11 = arith.constant 0 : index
    %24 = vector.load %arg4[%c0_10, %c0_11] : memref<1x128xf32, #tpu.memory_space<vmem>>, vector<1x128xf32>
    %25 = arith.addf %24, %23 : vector<1x128xf32>
    %c0_12 = arith.constant 0 : index
    %c0_13 = arith.constant 0 : index
    %26 = vector.load %arg5[%c0_12, %c0_13] : memref<1x128xf32, #tpu.memory_space<vmem>>, vector<1x128xf32>
    tpu.vector_store %arg5[%c0_12, %c0_13], %25 {strides = array<i32>} : memref<1x128xf32, #tpu.memory_space<vmem>>, vector<1x128xf32>,
    return
  }
  func.func @transform_0(%arg0: i32) -> (i32, i32) {
    %c0_i32 = arith.constant 0 : i32
    %c0_i32_0 = arith.constant 0 : i32
    return %c0_i32, %arg0 : i32, i32
  }
  func.func @transform_1(%arg0: i32) -> (i32, i32) {
    %c0_i32 = arith.constant 0 : i32
    %c0_i32_0 = arith.constant 0 : i32
    return %c0_i32, %arg0 : i32, i32
  }
  func.func @transform_2(%arg0: i32) -> (i32, i32) {
    %c0_i32 = arith.constant 0 : i32
    %c0_i32_0 = arith.constant 0 : i32
    %c0_i32_1 = arith.constant 0 : i32
    return %c0_i32, %c0_i32_0 : i32, i32
  }
  func.func @transform_3(%arg0: i32) -> (i32, i32) {
    %c0_i32 = arith.constant 0 : i32
    %c0_i32_0 = arith.constant 0 : i32
    return %c0_i32, %arg0 : i32, i32
  }
  func.func @transform_4(%arg0: i32) -> (i32, i32) {
    %c0_i32 = arith.constant 0 : i32
    %c0_i32_0 = arith.constant 0 : i32
    return %c0_i32, %arg0 : i32, i32
  }
}

</mosaic_0001>

<llo_original>
// kernel: bpr_forward.1
$region0: #{bpr_forward.1}
  #allocation0 [shape = 'u32[]', space=smem, size = 0x4, offset = 0x4, fixed_abs, tag = 'smem constant byte address 0x4 - core index']
  #allocation1 [shape = 'u32[144,128]{1,0:T(1,128)}', space=vmem, size = 0x12000, scoped, tag = 'internal scratch']
  %s0 = inlined_call_operand.vmem [shape: f32[32,128], index: 0, kind: input, shape index: {}]
  %s1 = inlined_call_operand.vmem [shape: f32[32,128], index: 1, kind: input, shape index: {}]
  %s2 = inlined_call_operand.vmem [shape: f32[32,2], index: 2, kind: input, shape index: {}]
  %s3 = inlined_call_operand.vmem [shape: f32[1,128], index: 3, kind: input, shape index: {}]
  %s4 = inlined_call_operand.vmem [shape: f32[1,128], index: 4, kind: output, shape index: {}]
  %s5 = sld [smem:[#allocation0]]
  $region26: #{bpr_forward.1} parent=0
    _
  %s7 = ssub.s32 1, %s5
  %s8 = scalar_select 0, %s7, %s5
  // Predicated region
  $region2: #{bpr_forward.1} parent=0 // pred_check
    _
  $region3: #{bpr_forward.1} parent=0 // pred_check_branch
    %10 = sbr.rel (0) target = $region5
  $region4: #{bpr_forward.1} parent=0 // pred_region
    _
  $region5: #{bpr_forward.1} parent=0 // pred_fallthru
    _
  // Predicated region
  $region6: #{bpr_forward.1} parent=0 // pred_check
    _
  $region7: #{bpr_forward.1} parent=0 // pred_check_branch
    %12 = sbr.rel (0) target = $region9
  $region8: #{bpr_forward.1} parent=0 // pred_region
    _
  $region9: #{bpr_forward.1} parent=0 // pred_fallthru
    _
  // Predicated region
  $region10: #{bpr_forward.1} parent=0 // pred_check
    _
  $region11: #{bpr_forward.1} parent=0 // pred_check_branch
    %14 = sbr.rel (0) target = $region13
  $region12: #{bpr_forward.1} parent=0 // pred_region
    _
  $region13: #{bpr_forward.1} parent=0 // pred_fallthru
    _
  // Predicated region
  $region14: #{bpr_forward.1} parent=0 // pred_check
    _
  $region15: #{bpr_forward.1} parent=0 // pred_check_branch
    %16 = sbr.rel (0) target = $region17
  $region16: #{bpr_forward.1} parent=0 // pred_region
    _
  $region17: #{bpr_forward.1} parent=0 // pred_fallthru
    _
  %v17 = vld [vmem:[%s0] sm:$0xff]
  %v18 = vld [vmem:[%s0 + $0x8] sm:$0xff]
  %v19 = vld [vmem:[%s0 + $0x10] sm:$0xff]
  %v20 = vld [vmem:[%s0 + $0x18] sm:$0xff]
  %v21 = vld [vmem:[%s1] sm:$0xff]
  %v22 = vld [vmem:[%s1 + $0x8] sm:$0xff]
  %v23 = vld [vmem:[%s1 + $0x10] sm:$0xff]
  %v24 = vld [vmem:[%s1 + $0x18] sm:$0xff]
  %v25 = vld [vmem:[%s2] sm:$0xff]
  %v26 = vld [vmem:[%s2 + $0x8] sm:$0xff]
  %v27 = vld [vmem:[%s2 + $0x10] sm:$0xff]
  %v28 = vld [vmem:[%s2 + $0x18] sm:$0xff]
  %30 = vset.pattern.permute.xlu0 0
  %31 = vperm.xlu0 %30, %v25
  %v32 = vpop.permute.xlu0 %31
  %35 = vset.pattern.permute.xlu0 0
  %36 = vperm.xlu0 %35, %v26
  %v37 = vpop.permute.xlu0 %36
  %40 = vset.pattern.permute.xlu0 0
  %41 = vperm.xlu0 %40, %v27
  %v42 = vpop.permute.xlu0 %41
  %45 = vset.pattern.permute.xlu0 0
  %46 = vperm.xlu0 %45, %v28
  %v47 = vpop.permute.xlu0 %46
  %v49 = vmul.f32 %v17, %v32
  %v50 = vmul.f32 %v18, %v37
  %v51 = vmul.f32 %v19, %v42
  %v52 = vmul.f32 %v20, %v47
  %53 = vset.pattern.permute.xlu0 1
  %54 = vperm.xlu0 %53, %v25
  %v55 = vpop.permute.xlu0 %54
  %57 = vset.pattern.permute.xlu0 1
  %58 = vperm.xlu0 %57, %v26
  %v59 = vpop.permute.xlu0 %58
  %61 = vset.pattern.permute.xlu0 1
  %62 = vperm.xlu0 %61, %v27
  %v63 = vpop.permute.xlu0 %62
  %65 = vset.pattern.permute.xlu0 1
  %66 = vperm.xlu0 %65, %v28
  %v67 = vpop.permute.xlu0 %66
  %v69 = vmul.f32 %v21, %v55
  %v70 = vmul.f32 %v22, %v59
  %v71 = vmul.f32 %v23, %v63
  %v72 = vmul.f32 %v24, %v67
  %v73 = vmul.f32 %v49, %v69
  %v74 = vmul.f32 %v50, %v70
  %v75 = vmul.f32 %v51, %v71
  %v76 = vmul.f32 %v52, %v72
  %v77 = vadd.f32 %v73, %v74
  %v78 = vadd.f32 %v77, %v75
  %v79 = vadd.f32 %v78, %v76
  %v80 = vrot.slane %v79, 4
  %v81 = vadd.f32 %v79, %v80
  %v82 = vrot.slane %v81, 2
  %v83 = vadd.f32 %v81, %v82
  %v84 = vrot.slane %v83, 1
  %v85 = vadd.f32 %v83, %v84
  %v86 = vmul.f32 %v49, %v49
  %v87 = vmul.f32 %v50, %v50
  %v88 = vmul.f32 %v51, %v51
  %v89 = vmul.f32 %v52, %v52
  %v90 = vadd.f32 %v86, %v87
  %v91 = vadd.f32 %v90, %v88
  %v92 = vadd.f32 %v91, %v89
  %v93 = vrot.slane %v92, 4
  %v94 = vadd.f32 %v92, %v93
  %v95 = vrot.slane %v94, 2
  %v96 = vadd.f32 %v94, %v95
  %v97 = vrot.slane %v96, 1
  %v98 = vadd.f32 %v96, %v97
  %v99 = vmul.f32 %v69, %v69
  %v100 = vmul.f32 %v70, %v70
  %v101 = vmul.f32 %v71, %v71
  %v102 = vmul.f32 %v72, %v72
  %v103 = vadd.f32 %v99, %v100
  %v104 = vadd.f32 %v103, %v101
  %v105 = vadd.f32 %v104, %v102
  %v106 = vrot.slane %v105, 4
  %v107 = vadd.f32 %v105, %v106
  %v108 = vrot.slane %v107, 2
  %v109 = vadd.f32 %v107, %v108
  %v110 = vrot.slane %v109, 1
  %v111 = vadd.f32 %v109, %v110
  %v112 = vmax.f32 %v98, 1e-16
  %v113 = vmax.f32 %v111, 1e-16
  %v114 = vmul.f32 %v112, %v113
  %v115 = vrsqrt.pop %v114
  %v116 = vmul.f32 %v85, %v115
  %v117 = vld [vmem:[%s3] sm:$0x1]
  %v118 = vadd.f32 %v117, %v116
  %119 = vst [vmem:[%s4] sm:$0x1] %v118
  // Predicated region
  $region18: #{bpr_forward.1} parent=0 // pred_check
    _
  $region19: #{bpr_forward.1} parent=0 // pred_check_branch
    %121 = sbr.rel (0) target = $region21
  $region20: #{bpr_forward.1} parent=0 // pred_region
    _
  $region21: #{bpr_forward.1} parent=0 // pred_fallthru
    _
  // Predicated region
  $region22: #{bpr_forward.1} parent=0 // pred_check
    _
  $region23: #{bpr_forward.1} parent=0 // pred_check_branch
    %123 = sbr.rel (0) target = $region25
  $region24: #{bpr_forward.1} parent=0 // pred_region
    _
  $region25: #{bpr_forward.1} parent=0 // pred_fallthru
    _

</llo_original>
